<compile_context>
chip_gen: v5e
topology: v5e:2x2
jax: 0.10.0
libtpu: 0.0.40
codegen_flags: <defaults>
</compile_context>

<pallas_src>
import functools

import jax
import jax.numpy as jnp
import numpy as np
from jax.experimental import pallas as pl
from jax.experimental.pallas import tpu as pltpu


def _round_up(v, m):
    return (v + m - 1) // m * m


def fold_bn(gamma, beta, mean, var, eps=1e-3):
    scale = gamma / jnp.sqrt(var + eps)
    bias = beta - mean * scale
    # Column vectors: broadcast per-channel over the lane (HW) axis.
    return (scale.reshape(-1, 1).astype(jnp.float32),
            bias.reshape(-1, 1).astype(jnp.float32))


def _fold_weights(w3_oihw, bn1, w1_oihw, bn2):
    """Fold BN scales into the conv weights (before the bf16 cast)."""
    Chid, Cin = w3_oihw.shape[0], w3_oihw.shape[1]
    Cout = w1_oihw.shape[0]
    s1, b1 = fold_bn(*bn1)
    s2, b2 = fold_bn(*bn2)
    # (Chid, Cin, 3, 3) -> (9, Chid, Cin) with tap index t = ky*3 + kx.
    w3s = jnp.transpose(w3_oihw * s1.reshape(Chid, 1, 1, 1), (2, 3, 0, 1))
    w3s = w3s.reshape(9, Chid, Cin).astype(jnp.bfloat16)
    # (Cout, Chid, 1, 1) -> (Cout, Chid), kept f32 (tiny, exact second matmul).
    w1f = (w1_oihw.reshape(Cout, Chid) * s2).astype(jnp.float32)
    return w3s, b1, w1f, b2


# Tap offsets (dy, dx); order matches t = (dy+1)*3 + (dx+1) = ky*3 + kx.
_TAP_OFFSETS = ((-1, -1), (-1, 0), (-1, 1),
                (0, -1), (0, 0), (0, 1),
                (1, -1), (1, 0), (1, 1))


def residual_kernel(xp_ref, w3_ref, b1_ref, w1_ref, b2_ref, m_ref, o_ref, *, W, F):
    """One grid step: NB whole images, full (padded) HW on the 128-lane axis.

    xp_ref: (NB, Cin, P)     f32   flat image with F leading zeros + trailing zeros
    w3_ref: (9, Chid, Cin)   bf16  3x3 conv weights * BN1 scale, per-tap slabs
    b1_ref: (Chid, 1)        f32   folded BN1 bias
    w1_ref: (Cout, Chid)     f32   1x1 conv weights * BN2 scale
    b2_ref: (Cout, 1)        f32   folded BN2 bias
    m_ref:  (2, T)           f32   [not-left-edge, not-right-edge] lane masks
    o_ref:  (NB, Cout, T)    f32   T = HW rounded up to a multiple of 128
    """
    NB = o_ref.shape[0]
    T = o_ref.shape[2]

    not_left = m_ref[0:1, :]      # (1, T): 1.0 where w != 0
    not_right = m_ref[1:2, :]     # (1, T): 1.0 where w != W-1

    b1 = b1_ref[...]
    w1 = w1_ref[...]
    b2 = b2_ref[...]

    for b in range(NB):
        # Single f32 load of the image (center tap); reused for the residual add.
        x_c = xp_ref[b, :, pl.ds(F, T)]                      # (Cin, T) f32

        acc = None
        for t, (dy, dx) in enumerate(_TAP_OFFSETS):
            if dy == 0 and dx == 0:
                tap = x_c
            else:
                # Shifted lane slice = conv tap (vertical zero-pad comes from the
                # zero front/back padding of the flat image).
                tap = xp_ref[b, :, pl.ds(F + dy * W + dx, T)]
            # Horizontal zero-pad: kill the row-wrap lanes (XLU/VPU slack).
            if dx == -1:
                tap = tap * not_left
            elif dx == 1:
                tap = tap * not_right
            part = jnp.dot(w3_ref[t], tap.astype(jnp.bfloat16),
                           preferred_element_type=jnp.float32)   # (Chid, T) f32
            acc = part if acc is None else acc + part

        # Folded BN1 bias + SiLU (f32 elementwise: VPU + EUP).
        h = acc + b1
        h = h * jax.nn.sigmoid(h)

        # 1x1 conv (BN2 scale folded in) + BN2 bias, then residual add.
        y = jnp.dot(w1, h, preferred_element_type=jnp.float32) + b2   # (Cout, T)
        o_ref[b] = (x_c + y).astype(o_ref.dtype)                      # lane-dense store


def _pick_batch_block(N, per_image_bytes, target_bytes=2 << 20, vmem_budget=20 << 20):
    """Images per grid step: aim for >=~2 MiB/step, stay under the VMEM budget
    (double-buffered), keep >=2 parallel grid steps when possible (v7x: 2 TCs)."""
    nb = min(N,
             max(1, target_bytes // max(1, per_image_bytes)),
             max(1, vmem_budget // max(1, 2 * per_image_bytes)))
    while nb > 1 and N // nb < 2:
        nb -= 1
    while N % nb:
        nb -= 1
    return nb


def residual_forward(x_nchw, w3_oihw, bn1, w1_oihw, bn2):
    """Fused MBConv residual block.  x_nchw: (N, Cin, H, W) float32."""
    N, Cin, H, W = x_nchw.shape
    Chid = w3_oihw.shape[0]
    Cout = w1_oihw.shape[0]
    assert Cout == Cin, "Residual.add path requires in_ch == out_ch and stride 1"
    assert w3_oihw.shape[1:] == (Cin, 3, 3) and w1_oihw.shape[1:] == (Chid, 1, 1)

    HW = H * W
    T = _round_up(HW, 128)                 # lane-dense output width
    F = W + 1                              # front zero pad (covers dy=-1, dx=-1)
    P = _round_up(F + T + W + 1, 128)      # padded flat length (back pad covers dy=+1)

    # ---- glue: layout prep in plain JAX (reshape NCHW -> (N,C,HW) is free) ----
    x_flat = x_nchw.reshape(N, Cin, HW).astype(jnp.float32)
    xp = jnp.pad(x_flat, ((0, 0), (0, 0), (F, P - F - HW)))          # (N, Cin, P)

    w3s, b1, w1f, b2 = _fold_weights(w3_oihw, bn1, w1_oihw, bn2)

    # Left/right edge masks (1.0 inside the row, 0.0 at the wrap lanes).
    col = jnp.arange(T, dtype=jnp.int32) % W
    masks = jnp.stack([(col != 0), (col != W - 1)]).astype(jnp.float32)   # (2, T)

    per_image_bytes = (Cin * P + Cout * T) * 4
    NB = _pick_batch_block(N, per_image_bytes)
    step_bytes = NB * per_image_bytes
    weight_bytes = (w3s.size * 2
                    + (b1.size + w1f.size + b2.size + masks.size) * 4)
    # Double-buffered blocks + resident weights, capped at v7x's 64 MiB VMEM.
    vmem_limit = int(min(64 * 1024 * 1024,
                         max(32 * 1024 * 1024, 4 * step_bytes + weight_bytes + (1 << 20))))

    kernel = functools.partial(residual_kernel, W=W, F=F)

    out_flat = pl.pallas_call(
        kernel,
        out_shape=jax.ShapeDtypeStruct((N, Cout, T), jnp.float32),
        grid_spec=pltpu.PrefetchScalarGridSpec(
            num_scalar_prefetch=0,
            grid=(N // NB,),
            in_specs=[
                pl.BlockSpec((NB, Cin, P), lambda b: (b, 0, 0)),
                # weights / biases / masks: constant index maps -> stay resident
                pl.BlockSpec((9, Chid, Cin), lambda b: (0, 0, 0)),
                pl.BlockSpec((Chid, 1), lambda b: (0, 0)),
                pl.BlockSpec((Cout, Chid), lambda b: (0, 0)),
                pl.BlockSpec((Cout, 1), lambda b: (0, 0)),
                pl.BlockSpec((2, T), lambda b: (0, 0)),
            ],
            out_specs=pl.BlockSpec((NB, Cout, T), lambda b: (b, 0, 0)),
        ),
        compiler_params=pltpu.CompilerParams(
            dimension_semantics=("parallel",),
            vmem_limit_bytes=vmem_limit),
    )(xp, w3s, b1, w1f, b2, masks)

    return out_flat[:, :, :HW].reshape(N, Cout, H, W)


# ---------------------------- references (tests) ----------------------------

def residual_reference(x_nchw, w3_oihw, bn1, w1_oihw, bn2):
    """Exact f32 plain-JAX reference matching the PyTorch forward (eval-mode BN)."""
    def bn(y, params):
        gamma, beta, mean, var = params
        return ((y - mean[None, :, None, None])
                / jnp.sqrt(var[None, :, None, None] + 1e-3)
                * gamma[None, :, None, None] + beta[None, :, None, None])

    y = jax.lax.conv_general_dilated(
        x_nchw, w3_oihw, (1, 1), ((1, 1), (1, 1)),
        dimension_numbers=('NCHW', 'OIHW', 'NCHW'),
        preferred_element_type=jnp.float32)
    y = bn(y, bn1)
    y = y * jax.nn.sigmoid(y)                                     # SiLU
    y = jax.lax.conv_general_dilated(
        y, w1_oihw, (1, 1), ((0, 0), (0, 0)),
        dimension_numbers=('NCHW', 'OIHW', 'NCHW'),
        preferred_element_type=jnp.float32)
    y = bn(y, bn2)
    return x_nchw + y                                             # DropPath(0) == id


def residual_mirror_reference(x, w3, bn1, w1, bn2):
    """Plain-JAX mirror of the kernel's exact math (folded scales, bf16 MXU inputs,
    f32 accumulation) for a tight numerical comparison."""
    N, Cin, H, W = x.shape
    w3s, b1, w1f, b2 = _fold_weights(w3, bn1, w1, bn2)
    xpad = jnp.pad(x, ((0, 0), (0, 0), (1, 1), (1, 1)))
    taps = jnp.stack([xpad[:, :, dy:dy + H, dx:dx + W]
                      for dy in range(3) for dx in range(3)], axis=1)  # (N,9,Cin,H,W)
    acc = jnp.einsum('ntchw,tkc->nkhw', taps.astype(jnp.bfloat16), w3s,
                     preferred_element_type=jnp.float32)
    h = acc + b1.reshape(1, -1, 1, 1)
    h = h * jax.nn.sigmoid(h)
    y = jnp.einsum('nkhw,ok->nohw', h, w1f,
                   preferred_element_type=jnp.float32) + b2.reshape(1, -1, 1, 1)
    return x + y


if __name__ == "__main__":
    # Residual(in_ch=4, out_ch=4, s=1, r=2, dp_rate=0, fused=True)
    N, Cin, H, W = 2, 4, 16, 16
    r = 2
    Chid = r * Cin          # 8
    Cout = Cin              # 4 (so self.add == True)

    key = jax.random.PRNGKey(0)
    ks = jax.random.split(key, 11)
    x = jax.random.normal(ks[0], (N, Cin, H, W), jnp.float32)
    w3 = jax.random.normal(ks[1], (Chid, Cin, 3, 3), jnp.float32) * 0.2
    w1 = jax.random.normal(ks[2], (Cout, Chid, 1, 1), jnp.float32) * 0.2
    bn1 = (1.0 + 0.1 * jax.random.normal(ks[3], (Chid,), jnp.float32),      # gamma
           0.1 * jax.random.normal(ks[4], (Chid,), jnp.float32),            # beta
           0.1 * jax.random.normal(ks[5], (Chid,), jnp.float32),            # running mean
           jnp.abs(jax.random.normal(ks[6], (Chid,), jnp.float32)) + 0.5)   # running var
    bn2 = (1.0 + 0.1 * jax.random.normal(ks[7], (Cout,), jnp.float32),
           0.1 * jax.random.normal(ks[8], (Cout,), jnp.float32),
           0.1 * jax.random.normal(ks[9], (Cout,), jnp.float32),
           jnp.abs(jax.random.normal(ks[10], (Cout,), jnp.float32)) + 0.5)

    out = jax.block_until_ready(residual_forward(x, w3, bn1, w1, bn2))

    # Tight check vs a reference mirroring the kernel's bf16 MXU inputs / folded BN.
    ref_mirror = jax.block_until_ready(
        residual_mirror_reference(x, w3, bn1, w1, bn2))
    np.testing.assert_allclose(np.asarray(out), np.asarray(ref_mirror),
                               rtol=2e-3, atol=2e-3)

    # Loose sanity check vs the exact f32 PyTorch-equivalent forward (bf16 MXU inputs
    # are an explicit, documented precision choice).
    ref_f32 = jax.block_until_ready(residual_reference(x, w3, bn1, w1, bn2))
    np.testing.assert_allclose(np.asarray(out), np.asarray(ref_f32),
                               rtol=5e-2, atol=5e-2)

    print("KERNEL_OK")
</pallas_src>

<mosaic_0001>
module attributes {stable_mosaic.version = 11 : i64} {
  func.func @residual_kernel(%arg0: i32, %arg1: memref<1x4x384xf32, #tpu.memory_space<vmem>>, %arg2: memref<9x8x4xbf16, #tpu.memory_space<vmem>>, %arg3: memref<8x1xf32, #tpu.memory_space<vmem>>, %arg4: memref<4x8xf32, #tpu.memory_space<vmem>>, %arg5: memref<4x1xf32, #tpu.memory_space<vmem>>, %arg6: memref<2x256xf32, #tpu.memory_space<vmem>>, %arg7: memref<1x4x256xf32, #tpu.memory_space<vmem>>) attributes {dimension_semantics = [#tpu.dimension_semantics<parallel>], iteration_bounds = array<i64: 2>, scalar_prefetch = 0 : i64, scratch_operands = 0 : i64, tpu.core_type = #tpu.core_type<tc>, window_params = [{transform_indices = @transform_0, window_bounds = array<i64: 1, 4, 384>}, {pipeline_mode = #tpu.pipeline_mode<synchronous>, transform_indices = @transform_1, window_bounds = array<i64: 9, 8, 4>}, {pipeline_mode = #tpu.pipeline_mode<synchronous>, transform_indices = @transform_2, window_bounds = array<i64: 8, 1>}, {pipeline_mode = #tpu.pipeline_mode<synchronous>, transform_indices = @transform_3, window_bounds = array<i64: 4, 8>}, {pipeline_mode = #tpu.pipeline_mode<synchronous>, transform_indices = @transform_4, window_bounds = array<i64: 4, 1>}, {pipeline_mode = #tpu.pipeline_mode<synchronous>, transform_indices = @transform_5, window_bounds = array<i64: 2, 256>}, {transform_indices = @transform_6, window_bounds = array<i64: 1, 4, 256>}]} {
    %c0 = arith.constant 0 : index
    %c0_0 = arith.constant 0 : index
    %0 = vector.load %arg6[%c0, %c0_0] : memref<2x256xf32, #tpu.memory_space<vmem>>, vector<1x256xf32>
    %c1 = arith.constant 1 : index
    %c0_1 = arith.constant 0 : index
    %1 = vector.load %arg6[%c1, %c0_1] : memref<2x256xf32, #tpu.memory_space<vmem>>, vector<1x256xf32>
    %c0_2 = arith.constant 0 : index
    %c0_3 = arith.constant 0 : index
    %2 = vector.load %arg3[%c0_2, %c0_3] : memref<8x1xf32, #tpu.memory_space<vmem>>, vector<8x1xf32>
    %c0_4 = arith.constant 0 : index
    %c0_5 = arith.constant 0 : index
    %3 = vector.load %arg4[%c0_4, %c0_5] : memref<4x8xf32, #tpu.memory_space<vmem>>, vector<4x8xf32>
    %c0_6 = arith.constant 0 : index
    %c0_7 = arith.constant 0 : index
    %4 = vector.load %arg5[%c0_6, %c0_7] : memref<4x1xf32, #tpu.memory_space<vmem>>, vector<4x1xf32>
    %c0_8 = arith.constant 0 : index
    %c0_9 = arith.constant 0 : index
    %c17 = arith.constant 17 : index
    %5 = vector.load %arg1[%c0_8, %c0_9, %c17] : memref<1x4x384xf32, #tpu.memory_space<vmem>>, vector<1x4x256xf32>
    %6 = vector.shape_cast %5 : vector<1x4x256xf32> to vector<4x256xf32>
    %c0_10 = arith.constant 0 : index
    %c0_11 = arith.constant 0 : index
    %c0_12 = arith.constant 0 : index
    %7 = vector.load %arg1[%c0_10, %c0_11, %c0_12] : memref<1x4x384xf32, #tpu.memory_space<vmem>>, vector<1x4x256xf32>
    %8 = vector.shape_cast %7 : vector<1x4x256xf32> to vector<4x256xf32>
    %9 = vector.broadcast %0 : vector<1x256xf32> to vector<4x256xf32>
    %10 = arith.mulf %8, %9 : vector<4x256xf32>
    %c0_13 = arith.constant 0 : index
    %c0_14 = arith.constant 0 : index
    %c0_15 = arith.constant 0 : index
    %11 = vector.load %arg2[%c0_13, %c0_14, %c0_15] : memref<9x8x4xbf16, #tpu.memory_space<vmem>>, vector<1x8x4xbf16>
    %12 = vector.shape_cast %11 : vector<1x8x4xbf16> to vector<8x4xbf16>
    %13 = arith.truncf %10 : vector<4x256xf32> to vector<4x256xbf16>
    %cst = arith.constant dense<0.000000e+00> : vector<8x256xf32>
    %14 = tpu.matmul %12, %13, %cst {dimension_numbers = #tpu.dot_dimension_numbers<[1], [0], [0], [1], [0, 0, 1, 1], [], []>} : vector<8x4xbf16>, vector<4x256xbf16>, vector<8x256xf32> -> vector<8x256xf32>
    %c0_16 = arith.constant 0 : index
    %c0_17 = arith.constant 0 : index
    %c1_18 = arith.constant 1 : index
    %15 = vector.load %arg1[%c0_16, %c0_17, %c1_18] : memref<1x4x384xf32, #tpu.memory_space<vmem>>, vector<1x4x256xf32>
    %16 = vector.shape_cast %15 : vector<1x4x256xf32> to vector<4x256xf32>
    %c1_19 = arith.constant 1 : index
    %c0_20 = arith.constant 0 : index
    %c0_21 = arith.constant 0 : index
    %17 = vector.load %arg2[%c1_19, %c0_20, %c0_21] : memref<9x8x4xbf16, #tpu.memory_space<vmem>>, vector<1x8x4xbf16>
    %18 = vector.shape_cast %17 : vector<1x8x4xbf16> to vector<8x4xbf16>
    %19 = arith.truncf %16 : vector<4x256xf32> to vector<4x256xbf16>
    %cst_22 = arith.constant dense<0.000000e+00> : vector<8x256xf32>
    %20 = tpu.matmul %18, %19, %cst_22 {dimension_numbers = #tpu.dot_dimension_numbers<[1], [0], [0], [1], [0, 0, 1, 1], [], []>} : vector<8x4xbf16>, vector<4x256xbf16>, vector<8x256xf32> -> vector<8x256xf32>
    %21 = arith.addf %14, %20 : vector<8x256xf32>
    %c0_23 = arith.constant 0 : index
    %c0_24 = arith.constant 0 : index
    %c2 = arith.constant 2 : index
    %22 = vector.load %arg1[%c0_23, %c0_24, %c2] : memref<1x4x384xf32, #tpu.memory_space<vmem>>, vector<1x4x256xf32>
    %23 = vector.shape_cast %22 : vector<1x4x256xf32> to vector<4x256xf32>
    %24 = vector.broadcast %1 : vector<1x256xf32> to vector<4x256xf32>
    %25 = arith.mulf %23, %24 : vector<4x256xf32>
    %c2_25 = arith.constant 2 : index
    %c0_26 = arith.constant 0 : index
    %c0_27 = arith.constant 0 : index
    %26 = vector.load %arg2[%c2_25, %c0_26, %c0_27] : memref<9x8x4xbf16, #tpu.memory_space<vmem>>, vector<1x8x4xbf16>
    %27 = vector.shape_cast %26 : vector<1x8x4xbf16> to vector<8x4xbf16>
    %28 = arith.truncf %25 : vector<4x256xf32> to vector<4x256xbf16>
    %cst_28 = arith.constant dense<0.000000e+00> : vector<8x256xf32>
    %29 = tpu.matmul %27, %28, %cst_28 {dimension_numbers = #tpu.dot_dimension_numbers<[1], [0], [0], [1], [0, 0, 1, 1], [], []>} : vector<8x4xbf16>, vector<4x256xbf16>, vector<8x256xf32> -> vector<8x256xf32>
    %30 = arith.addf %21, %29 : vector<8x256xf32>
    %c0_29 = arith.constant 0 : index
    %c0_30 = arith.constant 0 : index
    %c16 = arith.constant 16 : index
    %31 = vector.load %arg1[%c0_29, %c0_30, %c16] : memref<1x4x384xf32, #tpu.memory_space<vmem>>, vector<1x4x256xf32>
    %32 = vector.shape_cast %31 : vector<1x4x256xf32> to vector<4x256xf32>
    %33 = vector.broadcast %0 : vector<1x256xf32> to vector<4x256xf32>
    %34 = arith.mulf %32, %33 : vector<4x256xf32>
    %c3 = arith.constant 3 : index
    %c0_31 = arith.constant 0 : index
    %c0_32 = arith.constant 0 : index
    %35 = vector.load %arg2[%c3, %c0_31, %c0_32] : memref<9x8x4xbf16, #tpu.memory_space<vmem>>, vector<1x8x4xbf16>
    %36 = vector.shape_cast %35 : vector<1x8x4xbf16> to vector<8x4xbf16>
    %37 = arith.truncf %34 : vector<4x256xf32> to vector<4x256xbf16>
    %cst_33 = arith.constant dense<0.000000e+00> : vector<8x256xf32>
    %38 = tpu.matmul %36, %37, %cst_33 {dimension_numbers = #tpu.dot_dimension_numbers<[1], [0], [0], [1], [0, 0, 1, 1], [], []>} : vector<8x4xbf16>, vector<4x256xbf16>, vector<8x256xf32> -> vector<8x256xf32>
    %39 = arith.addf %30, %38 : vector<8x256xf32>
    %c4 = arith.constant 4 : index
    %c0_34 = arith.constant 0 : index
    %c0_35 = arith.constant 0 : index
    %40 = vector.load %arg2[%c4, %c0_34, %c0_35] : memref<9x8x4xbf16, #tpu.memory_space<vmem>>, vector<1x8x4xbf16>
    %41 = vector.shape_cast %40 : vector<1x8x4xbf16> to vector<8x4xbf16>
    %42 = arith.truncf %6 : vector<4x256xf32> to vector<4x256xbf16>
    %cst_36 = arith.constant dense<0.000000e+00> : vector<8x256xf32>
    %43 = tpu.matmul %41, %42, %cst_36 {dimension_numbers = #tpu.dot_dimension_numbers<[1], [0], [0], [1], [0, 0, 1, 1], [], []>} : vector<8x4xbf16>, vector<4x256xbf16>, vector<8x256xf32> -> vector<8x256xf32>
    %44 = arith.addf %39, %43 : vector<8x256xf32>
    %c0_37 = arith.constant 0 : index
    %c0_38 = arith.constant 0 : index
    %c18 = arith.constant 18 : index
    %45 = vector.load %arg1[%c0_37, %c0_38, %c18] : memref<1x4x384xf32, #tpu.memory_space<vmem>>, vector<1x4x256xf32>
    %46 = vector.shape_cast %45 : vector<1x4x256xf32> to vector<4x256xf32>
    %47 = vector.broadcast %1 : vector<1x256xf32> to vector<4x256xf32>
    %48 = arith.mulf %46, %47 : vector<4x256xf32>
    %c5 = arith.constant 5 : index
    %c0_39 = arith.constant 0 : index
    %c0_40 = arith.constant 0 : index
    %49 = vector.load %arg2[%c5, %c0_39, %c0_40] : memref<9x8x4xbf16, #tpu.memory_space<vmem>>, vector<1x8x4xbf16>
    %50 = vector.shape_cast %49 : vector<1x8x4xbf16> to vector<8x4xbf16>
    %51 = arith.truncf %48 : vector<4x256xf32> to vector<4x256xbf16>
    %cst_41 = arith.constant dense<0.000000e+00> : vector<8x256xf32>
    %52 = tpu.matmul %50, %51, %cst_41 {dimension_numbers = #tpu.dot_dimension_numbers<[1], [0], [0], [1], [0, 0, 1, 1], [], []>} : vector<8x4xbf16>, vector<4x256xbf16>, vector<8x256xf32> -> vector<8x256xf32>
    %53 = arith.addf %44, %52 : vector<8x256xf32>
    %c0_42 = arith.constant 0 : index
    %c0_43 = arith.constant 0 : index
    %c32 = arith.constant 32 : index
    %54 = vector.load %arg1[%c0_42, %c0_43, %c32] : memref<1x4x384xf32, #tpu.memory_space<vmem>>, vector<1x4x256xf32>
    %55 = vector.shape_cast %54 : vector<1x4x256xf32> to vector<4x256xf32>
    %56 = vector.broadcast %0 : vector<1x256xf32> to vector<4x256xf32>
    %57 = arith.mulf %55, %56 : vector<4x256xf32>
    %c6 = arith.constant 6 : index
    %c0_44 = arith.constant 0 : index
    %c0_45 = arith.constant 0 : index
    %58 = vector.load %arg2[%c6, %c0_44, %c0_45] : memref<9x8x4xbf16, #tpu.memory_space<vmem>>, vector<1x8x4xbf16>
    %59 = vector.shape_cast %58 : vector<1x8x4xbf16> to vector<8x4xbf16>
    %60 = arith.truncf %57 : vector<4x256xf32> to vector<4x256xbf16>
    %cst_46 = arith.constant dense<0.000000e+00> : vector<8x256xf32>
    %61 = tpu.matmul %59, %60, %cst_46 {dimension_numbers = #tpu.dot_dimension_numbers<[1], [0], [0], [1], [0, 0, 1, 1], [], []>} : vector<8x4xbf16>, vector<4x256xbf16>, vector<8x256xf32> -> vector<8x256xf32>
    %62 = arith.addf %53, %61 : vector<8x256xf32>
    %c0_47 = arith.constant 0 : index
    %c0_48 = arith.constant 0 : index
    %c33 = arith.constant 33 : index
    %63 = vector.load %arg1[%c0_47, %c0_48, %c33] : memref<1x4x384xf32, #tpu.memory_space<vmem>>, vector<1x4x256xf32>
    %64 = vector.shape_cast %63 : vector<1x4x256xf32> to vector<4x256xf32>
    %c7 = arith.constant 7 : index
    %c0_49 = arith.constant 0 : index
    %c0_50 = arith.constant 0 : index
    %65 = vector.load %arg2[%c7, %c0_49, %c0_50] : memref<9x8x4xbf16, #tpu.memory_space<vmem>>, vector<1x8x4xbf16>
    %66 = vector.shape_cast %65 : vector<1x8x4xbf16> to vector<8x4xbf16>
    %67 = arith.truncf %64 : vector<4x256xf32> to vector<4x256xbf16>
    %cst_51 = arith.constant dense<0.000000e+00> : vector<8x256xf32>
    %68 = tpu.matmul %66, %67, %cst_51 {dimension_numbers = #tpu.dot_dimension_numbers<[1], [0], [0], [1], [0, 0, 1, 1], [], []>} : vector<8x4xbf16>, vector<4x256xbf16>, vector<8x256xf32> -> vector<8x256xf32>
    %69 = arith.addf %62, %68 : vector<8x256xf32>
    %c0_52 = arith.constant 0 : index
    %c0_53 = arith.constant 0 : index
    %c34 = arith.constant 34 : index
    %70 = vector.load %arg1[%c0_52, %c0_53, %c34] : memref<1x4x384xf32, #tpu.memory_space<vmem>>, vector<1x4x256xf32>
    %71 = vector.shape_cast %70 : vector<1x4x256xf32> to vector<4x256xf32>
    %72 = vector.broadcast %1 : vector<1x256xf32> to vector<4x256xf32>
    %73 = arith.mulf %71, %72 : vector<4x256xf32>
    %c8 = arith.constant 8 : index
    %c0_54 = arith.constant 0 : index
    %c0_55 = arith.constant 0 : index
    %74 = vector.load %arg2[%c8, %c0_54, %c0_55] : memref<9x8x4xbf16, #tpu.memory_space<vmem>>, vector<1x8x4xbf16>
    %75 = vector.shape_cast %74 : vector<1x8x4xbf16> to vector<8x4xbf16>
    %76 = arith.truncf %73 : vector<4x256xf32> to vector<4x256xbf16>
    %cst_56 = arith.constant dense<0.000000e+00> : vector<8x256xf32>
    %77 = tpu.matmul %75, %76, %cst_56 {dimension_numbers = #tpu.dot_dimension_numbers<[1], [0], [0], [1], [0, 0, 1, 1], [], []>} : vector<8x4xbf16>, vector<4x256xbf16>, vector<8x256xf32> -> vector<8x256xf32>
    %78 = arith.addf %69, %77 : vector<8x256xf32>
    %79 = vector.broadcast %2 : vector<8x1xf32> to vector<8x256xf32>
    %80 = arith.addf %78, %79 : vector<8x256xf32>
    %81 = arith.negf %80 : vector<8x256xf32>
    %82 = math.exp %81 : vector<8x256xf32>
    %cst_57 = arith.constant 1.000000e+00 : f32
    %83 = vector.broadcast %cst_57 : f32 to vector<8x256xf32>
    %84 = arith.addf %83, %82 : vector<8x256xf32>
    %85 = arith.divf %83, %84 : vector<8x256xf32>
    %86 = arith.mulf %80, %85 : vector<8x256xf32>
    %cst_58 = arith.constant dense<0.000000e+00> : vector<4x256xf32>
    %87 = tpu.matmul %3, %86, %cst_58 {dimension_numbers = #tpu.dot_dimension_numbers<[1], [0], [0], [1], [0, 0, 1, 1], [], []>} : vector<4x8xf32>, vector<8x256xf32>, vector<4x256xf32> -> vector<4x256xf32>
    %88 = vector.broadcast %4 : vector<4x1xf32> to vector<4x256xf32>
    %89 = arith.addf %87, %88 : vector<4x256xf32>
    %90 = arith.addf %6, %89 : vector<4x256xf32>
    %c0_59 = arith.constant 0 : index
    %c0_60 = arith.constant 0 : index
    %c0_61 = arith.constant 0 : index
    %91 = vector.load %arg7[%c0_59, %c0_60, %c0_61] : memref<1x4x256xf32, #tpu.memory_space<vmem>>, vector<1x4x256xf32>
    %92 = vector.shape_cast %91 : vector<1x4x256xf32> to vector<4x256xf32>
    %93 = vector.shape_cast %90 : vector<4x256xf32> to vector<1x4x256xf32>
    tpu.vector_store %arg7[%c0_59, %c0_60, %c0_61], %93 {strides = array<i32>} : memref<1x4x256xf32, #tpu.memory_space<vmem>>, vector<1x4x256xf32>,
    return
  }
  func.func @transform_0(%arg0: i32) -> (i32, i32, i32) {
    %c0_i32 = arith.constant 0 : i32
    %c0_i32_0 = arith.constant 0 : i32
    %c0_i32_1 = arith.constant 0 : i32
    return %arg0, %c0_i32, %c0_i32_0 : i32, i32, i32
  }
  func.func @transform_1(%arg0: i32) -> (i32, i32, i32) {
    %c0_i32 = arith.constant 0 : i32
    %c0_i32_0 = arith.constant 0 : i32
    %c0_i32_1 = arith.constant 0 : i32
    %c0_i32_2 = arith.constant 0 : i32
    return %c0_i32, %c0_i32_0, %c0_i32_1 : i32, i32, i32
  }
  func.func @transform_2(%arg0: i32) -> (i32, i32) {
    %c0_i32 = arith.constant 0 : i32
    %c0_i32_0 = arith.constant 0 : i32
    %c0_i32_1 = arith.constant 0 : i32
    return %c0_i32, %c0_i32_0 : i32, i32
  }
  func.func @transform_3(%arg0: i32) -> (i32, i32) {
    %c0_i32 = arith.constant 0 : i32
    %c0_i32_0 = arith.constant 0 : i32
    %c0_i32_1 = arith.constant 0 : i32
    return %c0_i32, %c0_i32_0 : i32, i32
  }
  func.func @transform_4(%arg0: i32) -> (i32, i32) {
    %c0_i32 = arith.constant 0 : i32
    %c0_i32_0 = arith.constant 0 : i32
    %c0_i32_1 = arith.constant 0 : i32
    return %c0_i32, %c0_i32_0 : i32, i32
  }
  func.func @transform_5(%arg0: i32) -> (i32, i32) {
    %c0_i32 = arith.constant 0 : i32
    %c0_i32_0 = arith.constant 0 : i32
    %c0_i32_1 = arith.constant 0 : i32
    return %c0_i32, %c0_i32_0 : i32, i32
  }
  func.func @transform_6(%arg0: i32) -> (i32, i32, i32) {
    %c0_i32 = arith.constant 0 : i32
    %c0_i32_0 = arith.constant 0 : i32
    %c0_i32_1 = arith.constant 0 : i32
    return %arg0, %c0_i32, %c0_i32_0 : i32, i32, i32
  }
}

</mosaic_0001>

<llo_original>
// kernel: tpu_custom_call.1
$region0: #{tpu_custom_call.1}
  #allocation0 [shape = 'u32[]', space=smem, size = 0x4, offset = 0x4, fixed_abs, tag = 'smem constant byte address 0x4 - core index']
  #allocation1 [shape = 'u32[72,128]{1,0:T(1,128)}', space=vmem, size = 0x9000, scoped, tag = 'internal scratch']
  %s0 = inlined_call_operand.vmem [shape: f32[2,4,384], index: 0, kind: input, shape index: {}]
  %s1 = inlined_call_operand.vmem [shape: bf16[9,8,4], index: 1, kind: input, shape index: {}]
  %s2 = inlined_call_operand.vmem [shape: f32[8,1], index: 2, kind: input, shape index: {}]
  %s3 = inlined_call_operand.vmem [shape: f32[4,8], index: 3, kind: input, shape index: {}]
  %s4 = inlined_call_operand.vmem [shape: f32[4,1], index: 4, kind: input, shape index: {}]
  %s5 = inlined_call_operand.vmem [shape: f32[2,256], index: 5, kind: input, shape index: {}]
  %s6 = inlined_call_operand.hbm [shape: f32[2,4,256], index: 6, kind: output, shape index: {}]
  %s7 = sld [smem:[#allocation0]]
  $region57: #{tpu_custom_call.1} parent=0
    _
  %s9 = ssub.s32 1, %s7
  %s10 = scalar_select 0, %s9, %s7
  $region1: #{tpu_custom_call.1} parent=0
    #allocation2 [shape = 'u8[8192]{0}', space=vmem, size = 0x2000, scoped, tag = 'output window, operand 0']
    #allocation3 [shape = 's32[2]{0}', space=sflag, size = 0x8, scoped, tag = 'scoped memory for tpu_custom_call.1']
    %11 = vsyncpa [#allocation3], 0
    %s12 = scalar_lea.sflag [#allocation3], 1
    %13 = vsyncpa %s12, 0
    loop: start=0, step=1, limit=4
    $region2: #{tpu_custom_call.1} parent=1 // loop_pre_header
      _
    $region3: #{tpu_custom_call.1} parent=1 // loop_header
      %s15 = sphi 0, %s19
      %p16 = scmp.ge.s32.totalorder %s15, 4
      %s25 = sphi 0, %s27
      %s28 = sphi 0, %s25
      %s29 = sphi 0, %s28
      %s45 = sphi 0, %s29
      %s49 = sphi 0, %s49
      %s51 = sphi 0, %s49
      %s52 = sphi 0, %s51
      %s66 = sphi 0, %s52
      %s70 = sphi 0, %s70
      %s72 = sphi 0, %s70
      %s73 = sphi 0, %s72
      %s87 = sphi 0, %s73
      %s91 = sphi 0, %s91
      %s93 = sphi 0, %s91
      %s94 = sphi 0, %s93
      %s108 = sphi 0, %s94
      %s112 = sphi 0, %s112
      %s114 = sphi 0, %s112
      %s115 = sphi 0, %s114
      %s129 = sphi 0, %s115
      %s133 = sphi 0, %s133
      %s135 = sphi 0, %s133
      %s136 = sphi 0, %s135
      %s150 = sphi 0, %s136
      %s156 = sphi 0, %s158
      %s159 = sphi 0, %s156
      %s160 = sphi 0, %s159
      %s176 = sphi 0, %s160
    $region4: #{tpu_custom_call.1} parent=1 // loop_header_branch
      %18 = sbr.rel (%p16) target = $region8
    $region5: #{tpu_custom_call.1} parent=1 // loop_body
      %s20 = ssub.s32 %s15, 1
      %s21 = ssub.s32 %s15, 2
      %s22 = sadd.s32 %s15, 1
      %s23 = ssub.s32 %s15, %s22
      %p24 = scmp.eq.s32.totalorder %s23, 0
      %s26 = sadd.s32 %s25, 1
      %s27 = scalar_select %p24, %s25, %s26
      %p30 = pneg %p24
      %p31 = scmp.eq.s32.totalorder %s15, 1
      %p32 = por %p30, %p31
      %p33 = scmp.ne.s32.totalorder %s25, %s28
      %p34 = scmp.eq.s32.totalorder %s15, 0
      %p35 = por %p33, %p34
      %p36 = scmp.ne.s32.totalorder %s25, %s28
      %p37 = scmp.eq.s32.totalorder %s20, 1
      %p38 = por %p36, %p37
      %p39 = scmp.ne.s32.totalorder %s28, %s29
      %p40 = scmp.eq.s32.totalorder %s20, 0
      %p41 = por %p39, %p40
      %p42 = scmp.ne.s32.totalorder %s28, %s29
      %p43 = scmp.eq.s32.totalorder %s21, 1
      %p44 = por %p42, %p43
      %p46 = scmp.ne.s32.totalorder %s29, %s45
      %p47 = scmp.eq.s32.totalorder %s21, 0
      %p48 = por %p46, %p47
      %s50 = sadd.s32 %s49, 1
      %p53 = scmp.eq.s32.totalorder %s15, 1
      %p54 = scmp.ne.s32.totalorder %s49, %s51
      %p55 = scmp.eq.s32.totalorder %s15, 0
      %p56 = por %p54, %p55
      %p57 = scmp.ne.s32.totalorder %s49, %s51
      %p58 = scmp.eq.s32.totalorder %s20, 1
      %p59 = por %p57, %p58
      %p60 = scmp.ne.s32.totalorder %s51, %s52
      %p61 = scmp.eq.s32.totalorder %s20, 0
      %p62 = por %p60, %p61
      %p63 = scmp.ne.s32.totalorder %s51, %s52
      %p64 = scmp.eq.s32.totalorder %s21, 1
      %p65 = por %p63, %p64
      %p67 = scmp.ne.s32.totalorder %s52, %s66
      %p68 = scmp.eq.s32.totalorder %s21, 0
      %p69 = por %p67, %p68
      %s71 = sadd.s32 %s70, 1
      %p74 = scmp.eq.s32.totalorder %s15, 1
      %p75 = scmp.ne.s32.totalorder %s70, %s72
      %p76 = scmp.eq.s32.totalorder %s15, 0
      %p77 = por %p75, %p76
      %p78 = scmp.ne.s32.totalorder %s70, %s72
      %p79 = scmp.eq.s32.totalorder %s20, 1
      %p80 = por %p78, %p79
      %p81 = scmp.ne.s32.totalorder %s72, %s73
      %p82 = scmp.eq.s32.totalorder %s20, 0
      %p83 = por %p81, %p82
      %p84 = scmp.ne.s32.totalorder %s72, %s73
      %p85 = scmp.eq.s32.totalorder %s21, 1
      %p86 = por %p84, %p85
      %p88 = scmp.ne.s32.totalorder %s73, %s87
      %p89 = scmp.eq.s32.totalorder %s21, 0
      %p90 = por %p88, %p89
      %s92 = sadd.s32 %s91, 1
      %p95 = scmp.eq.s32.totalorder %s15, 1
      %p96 = scmp.ne.s32.totalorder %s91, %s93
      %p97 = scmp.eq.s32.totalorder %s15, 0
      %p98 = por %p96, %p97
      %p99 = scmp.ne.s32.totalorder %s91, %s93
      %p100 = scmp.eq.s32.totalorder %s20, 1
      %p101 = por %p99, %p100
      %p102 = scmp.ne.s32.totalorder %s93, %s94
      %p103 = scmp.eq.s32.totalorder %s20, 0
      %p104 = por %p102, %p103
      %p105 = scmp.ne.s32.totalorder %s93, %s94
      %p106 = scmp.eq.s32.totalorder %s21, 1
      %p107 = por %p105, %p106
      %p109 = scmp.ne.s32.totalorder %s94, %s108
      %p110 = scmp.eq.s32.totalorder %s21, 0
      %p111 = por %p109, %p110
      %s113 = sadd.s32 %s112, 1
      %p116 = scmp.eq.s32.totalorder %s15, 1
      %p117 = scmp.ne.s32.totalorder %s112, %s114
      %p118 = scmp.eq.s32.totalorder %s15, 0
      %p119 = por %p117, %p118
      %p120 = scmp.ne.s32.totalorder %s112, %s114
      %p121 = scmp.eq.s32.totalorder %s20, 1
      %p122 = por %p120, %p121
      %p123 = scmp.ne.s32.totalorder %s114, %s115
      %p124 = scmp.eq.s32.totalorder %s20, 0
      %p125 = por %p123, %p124
      %p126 = scmp.ne.s32.totalorder %s114, %s115
      %p127 = scmp.eq.s32.totalorder %s21, 1
      %p128 = por %p126, %p127
      %p130 = scmp.ne.s32.totalorder %s115, %s129
      %p131 = scmp.eq.s32.totalorder %s21, 0
      %p132 = por %p130, %p131
      %s134 = sadd.s32 %s133, 1
      %p137 = scmp.eq.s32.totalorder %s15, 1
      %p138 = scmp.ne.s32.totalorder %s133, %s135
      %p139 = scmp.eq.s32.totalorder %s15, 0
      %p140 = por %p138, %p139
      %p141 = scmp.ne.s32.totalorder %s133, %s135
      %p142 = scmp.eq.s32.totalorder %s20, 1
      %p143 = por %p141, %p142
      %p144 = scmp.ne.s32.totalorder %s135, %s136
      %p145 = scmp.eq.s32.totalorder %s20, 0
      %p146 = por %p144, %p145
      %p147 = scmp.ne.s32.totalorder %s135, %s136
      %p148 = scmp.eq.s32.totalorder %s21, 1
      %p149 = por %p147, %p148
      %p151 = scmp.ne.s32.totalorder %s136, %s150
      %p152 = scmp.eq.s32.totalorder %s21, 0
      %p153 = por %p151, %p152
      %s154 = ssub.s32 %s15, %s22
      %p155 = scmp.eq.s32.totalorder %s154, 0
      %s157 = sadd.s32 %s156, 1
      %s158 = scalar_select %p155, %s156, %s157
      %p161 = pneg %p155
      %p162 = scmp.eq.s32.totalorder %s15, 1
      %p163 = por %p161, %p162
      %p164 = scmp.ne.s32.totalorder %s156, %s159
      %p165 = scmp.eq.s32.totalorder %s15, 0
      %p166 = por %p164, %p165
      %p167 = scmp.ne.s32.totalorder %s156, %s159
      %p168 = scmp.eq.s32.totalorder %s20, 1
      %p169 = por %p167, %p168
      %p170 = scmp.ne.s32.totalorder %s159, %s160
      %p171 = scmp.eq.s32.totalorder %s20, 0
      %p172 = por %p170, %p171
      %p173 = scmp.ne.s32.totalorder %s159, %s160
      %p174 = scmp.eq.s32.totalorder %s21, 1
      %p175 = por %p173, %p174
      %p177 = scmp.ne.s32.totalorder %s160, %s176
      %p178 = scmp.eq.s32.totalorder %s21, 0
      %p179 = por %p177, %p178
      %p180 = scmp.le.s32.totalorder 1, %s15
      %p181 = scmp.lt.s32.totalorder %s15, 3
      %p182 = pnand %p180, %p181
      %p183 = pneg %p182
      // Predicated region
      $region9: #{tpu_custom_call.1} parent=5 // pred_check
        _
      $region10: #{tpu_custom_call.1} parent=5 // pred_check_branch
        %185 = sbr.rel (%p182) target = $region12
      $region11: #{tpu_custom_call.1} parent=5 // pred_region
        %s186 = ssub.s32 %s15, 1
        // Predicated region
        $region13: #{tpu_custom_call.1} parent=11 // pred_check
          %p187 = pneg %p62
        $region14: #{tpu_custom_call.1} parent=11 // pred_check_branch
          %189 = sbr.rel (%p187) target = $region16
        $region15: #{tpu_custom_call.1} parent=11 // pred_region
          _
        $region16: #{tpu_custom_call.1} parent=11 // pred_fallthru
          _
        // Predicated region
        $region17: #{tpu_custom_call.1} parent=11 // pred_check
          %p190 = pneg %p83
        $region18: #{tpu_custom_call.1} parent=11 // pred_check_branch
          %192 = sbr.rel (%p190) target = $region20
        $region19: #{tpu_custom_call.1} parent=11 // pred_region
          _
        $region20: #{tpu_custom_call.1} parent=11 // pred_fallthru
          _
        // Predicated region
        $region21: #{tpu_custom_call.1} parent=11 // pred_check
          %p193 = pneg %p104
        $region22: #{tpu_custom_call.1} parent=11 // pred_check_branch
          %195 = sbr.rel (%p193) target = $region24
        $region23: #{tpu_custom_call.1} parent=11 // pred_region
          _
        $region24: #{tpu_custom_call.1} parent=11 // pred_fallthru
          _
        // Predicated region
        $region25: #{tpu_custom_call.1} parent=11 // pred_check
          %p196 = pneg %p125
        $region26: #{tpu_custom_call.1} parent=11 // pred_check_branch
          %198 = sbr.rel (%p196) target = $region28
        $region27: #{tpu_custom_call.1} parent=11 // pred_region
          _
        $region28: #{tpu_custom_call.1} parent=11 // pred_fallthru
          _
        // Predicated region
        $region29: #{tpu_custom_call.1} parent=11 // pred_check
          %p199 = pneg %p146
        $region30: #{tpu_custom_call.1} parent=11 // pred_check_branch
          %201 = sbr.rel (%p199) target = $region32
        $region31: #{tpu_custom_call.1} parent=11 // pred_region
          _
        $region32: #{tpu_custom_call.1} parent=11 // pred_fallthru
          _
      $region12: #{tpu_custom_call.1} parent=5 // pred_fallthru
        _
      %p202 = scmp.lt.s32.totalorder %s15, 2
      // Predicated region
      $region33: #{tpu_custom_call.1} parent=5 // pred_check
        %p203 = pneg %p202
      $region34: #{tpu_custom_call.1} parent=5 // pred_check_branch
        %205 = sbr.rel (%p203) target = $region36
      $region35: #{tpu_custom_call.1} parent=5 // pred_region
        // Predicated region
        $region37: #{tpu_custom_call.1} parent=35 // pred_check
          %p206 = pneg %p35
        $region38: #{tpu_custom_call.1} parent=35 // pred_check_branch
          %208 = sbr.rel (%p206) target = $region40
        $region39: #{tpu_custom_call.1} parent=35 // pred_region
          %p209 = scmp.lt.s32.totalorder %s15, 1
          %s210 = scalar_select %p209, %s15, 1
          %s211 = smul.addr %s210, 3
          %s212 = smul.addr %s211, 4
          %s213 = scalar_lea.vmem %s0, %s212
        $region40: #{tpu_custom_call.1} parent=35 // pred_fallthru
          _
      $region36: #{tpu_custom_call.1} parent=5 // pred_fallthru
        _
      %p214 = scmp.le.s32.totalorder 1, %s15
      %p215 = scmp.lt.s32.totalorder %s15, 3
      %p216 = pnand %p214, %p215
      %p217 = pneg %p216
      // Predicated region
      $region41: #{tpu_custom_call.1} parent=5 // pred_check
        _
      $region42: #{tpu_custom_call.1} parent=5 // pred_check_branch
        %219 = sbr.rel (%p216) target = $region44
      $region43: #{tpu_custom_call.1} parent=5 // pred_region
        %s220 = ssub.s32 %s15, 1
        %p221 = scmp.lt.s32.totalorder %s20, 1
        %s222 = scalar_select %p221, %s20, 1
        %s223 = smul.addr %s222, 3
        %s224 = smul.addr %s223, 4
        %s225 = scalar_lea.vmem %s0, %s224
        %p226 = pneg %p41
        %p227 = pneg %p38
        %p228 = pneg %p62
        %p229 = pneg %p59
        %p230 = pneg %p83
        %p231 = pneg %p80
        %p232 = pneg %p104
        %p233 = pneg %p101
        %p234 = pneg %p125
        %p235 = pneg %p122
        %p236 = pneg %p146
        %p237 = pneg %p143
        %p238 = pneg %p172
        %p239 = pneg %p169
        %s240 = sand.u32 %s159, 1
        %s241 = scalar_lea.sflag [#allocation3], %s240
        %s242 = sand.u32 %s159, 1
        %s243 = smul.addr %s242, 8
        %s244 = scalar_lea.vmem [#allocation2], %s243
        %p245 = scmp.lt.s32.totalorder %s20, 1
        %s246 = scalar_select %p245, %s20, 1
        %s247 = smul.addr %s246, 3
        %s248 = smul.addr %s247, 4
        %s249 = scalar_lea.vmem %s0, %s248
        %v251 = vld [vmem:[%s5] ss:$2 sm:$0x3]
        %s252 = scalar_lea.vmem %s5, 1
        %v253 = vld [vmem:[%s252] ss:$2 sm:$0x3]
        %v254 = vld [vmem:[%s2] sm:$0xff]
        %v255 = vld [vmem:[%s3] sm:$0xf]
        %v256 = vld [vmem:[%s4] sm:$0xf]
        %v257 = vld [vmem:[%s249] sm:$0xff]
        %v258 = vld [vmem:[%s249 + $0x8] sm:$0xf]
        %v259 = vld [vmem:[%s249] sm:$0xff]
        %v261 = vperm.slane %v251, 0
        %v262 = vperm.slane %v251, 1
        %v263 = vrot.slane %v262, 4
        %vm264 = vcmask 1043456
        %v265 = vsel %vm264, %v261, %v263
        %v267 = vmul.f32 %v259, %v265
        %v268 = vld [vmem:[%s1] sm:$0xf]
        %270 = vst [vmem:[#allocation1] ss:$2 sm:$0xff] %v267
        %v271 = vld.sshfl [vmem:[#allocation1] sm:$0xff pattern:$0x75316420]
        %v272 = vld.sshfl [vmem:[#allocation1 + $0x8] sm:$0xff pattern:$0x75316420]
        %v275 = vpack.c.bf16 %v271, %v271
        %v276 = vpack.c.bf16 %v272, %v272
        %v277 = vld [vmem:[%s249] sm:$0xff]
        %v278 = vld [vmem:[%s249 + $0x8] sm:$0xf]
        %s279 = scalar_lea.vmem %s1, 4
        %v280 = vld [vmem:[%s279] sm:$0xf]
        %283 = vst [vmem:[#allocation1] ss:$2 sm:$0xff] %v277
        %s284 = scalar_lea.vmem [#allocation1], 16
        %285 = vst [vmem:[%s284] ss:$2 sm:$0xff] %v278
        %v286 = vld.sshfl [vmem:[#allocation1] sm:$0xff pattern:$0x75316420]
        %v287 = vld.sshfl [vmem:[#allocation1 + $0x8] sm:$0xff pattern:$0x75316420]
        %v288 = vld.sshfl [vmem:[#allocation1 + $0x10] sm:$0xff pattern:$0x75316420]
        %v292 = vpack.c.bf16 %v286, %v286
        %v293 = vpack.c.bf16 %v287, %v287
        %v294 = vpack.c.bf16 %v288, %v288
        %298 = vrot.lane.b32.xlu0 %v292, 127
        %v299 = vpop.permute.xlu0 %298
        %300 = vrot.lane.b32.xlu0 %v293, 127
        %v301 = vpop.permute.xlu0 %300
        %302 = vrot.lane.b32.xlu0 %v294, 127
        %v303 = vpop.permute.xlu0 %302
        %vm304 = vcmask 1039360
        %v305 = vsel %vm304, %v299, %v301
        %v306 = vsel %vm304, %v301, %v303
        %vm307 = vcmask 31744
        %v309 = vsel %vm307, %v280, 0
        %vm311 = vcmask 1041408
        %v313 = vsel %vm311, %v305, 0
        %v316 = vsel %vm311, %v306, 0
        %318 = vmatpush.bf16.msra.mxu0 0
        %319 = vmatpush.bf16.msra.mxu0 0
        %320 = vmatpush.bf16.msra.mxu0 0
        %321 = vmatpush.bf16.msra.mxu0 0
        %322 = vmatpush.bf16.msra.mxu0 0
        %323 = vmatpush.bf16.msra.mxu0 0
        %324 = vmatpush.bf16.msra.mxu0 0
        %325 = vmatpush.bf16.msra.mxu0 %v313
        %326 = vmatmul.bf16.gmra.mxu0 %v309
        %v327 = vpop.f32.mrf.mxu0
        %v328 = vadd.f32 0.0, %v327
        %v329 = vpop.f32.mrf.mxu0
        %330 = vdwg.mxu0
        %331 = vmatpush.bf16.msra.mxu0 0
        %332 = vmatpush.bf16.msra.mxu0 0
        %333 = vmatpush.bf16.msra.mxu0 0
        %334 = vmatpush.bf16.msra.mxu0 0
        %335 = vmatpush.bf16.msra.mxu0 0
        %336 = vmatpush.bf16.msra.mxu0 0
        %337 = vmatpush.bf16.msra.mxu0 0
        %338 = vmatpush.bf16.msra.mxu0 %v316
        %339 = vmatmul.bf16.gmra.mxu0 %v309
        %v340 = vpop.f32.mrf.mxu0
        %v341 = vadd.f32 0.0, %v340
        %v342 = vpop.f32.mrf.mxu0
        %343 = vdwg.mxu0
        %v345 = vsel %vm307, %v268, 0
        %v348 = vsel %vm311, %v275, 0
        %v351 = vsel %vm311, %v276, 0
        %353 = vmatpush.bf16.msra.mxu0 0
        %354 = vmatpush.bf16.msra.mxu0 0
        %355 = vmatpush.bf16.msra.mxu0 0
        %356 = vmatpush.bf16.msra.mxu0 0
        %357 = vmatpush.bf16.msra.mxu0 0
        %358 = vmatpush.bf16.msra.mxu0 0
        %359 = vmatpush.bf16.msra.mxu0 0
        %360 = vmatpush.bf16.msra.mxu0 %v348
        %361 = vmatmul.bf16.gmra.mxu0 %v345
        %v362 = vpop.f32.mrf.mxu0
        %v363 = vadd.f32 %v328, %v362
        %v364 = vpop.f32.mrf.mxu0
        %365 = vdwg.mxu0
        %366 = vmatpush.bf16.msra.mxu0 0
        %367 = vmatpush.bf16.msra.mxu0 0
        %368 = vmatpush.bf16.msra.mxu0 0
        %369 = vmatpush.bf16.msra.mxu0 0
        %370 = vmatpush.bf16.msra.mxu0 0
        %371 = vmatpush.bf16.msra.mxu0 0
        %372 = vmatpush.bf16.msra.mxu0 0
        %373 = vmatpush.bf16.msra.mxu0 %v351
        %374 = vmatmul.bf16.gmra.mxu0 %v345
        %v375 = vpop.f32.mrf.mxu0
        %v376 = vadd.f32 %v341, %v375
        %v377 = vpop.f32.mrf.mxu0
        %378 = vdwg.mxu0
        %v379 = vld [vmem:[%s249] sm:$0xff]
        %v380 = vld [vmem:[%s249 + $0x8] sm:$0xf]
        %v382 = vperm.slane %v253, 0
        %v383 = vperm.slane %v253, 1
        %v384 = vrot.slane %v383, 4
        %v385 = vsel %vm264, %v382, %v384
        %386 = vrot.lane.b32.xlu0 %v385, 2
        %v387 = vpop.permute.xlu0 %386
        %v388 = vrot.slane %v387, 4
        %vm389 = vcmask 15360
        %v390 = vsel %vm389, %v388, %v387
        %v393 = vmul.f32 %v379, %v390
        %v394 = vmul.f32 %v380, %v388
        %s395 = scalar_lea.vmem %s1, 8
        %v396 = vld [vmem:[%s395] sm:$0xf]
        %399 = vst [vmem:[#allocation1] ss:$2 sm:$0xff] %v393
        %s400 = scalar_lea.vmem [#allocation1], 16
        %401 = vst [vmem:[%s400] ss:$2 sm:$0xff] %v394
        %v402 = vld.sshfl [vmem:[#allocation1] sm:$0xff pattern:$0x75316420]
        %v403 = vld.sshfl [vmem:[#allocation1 + $0x8] sm:$0xff pattern:$0x75316420]
        %v404 = vld.sshfl [vmem:[#allocation1 + $0x10] sm:$0xff pattern:$0x75316420]
        %v408 = vpack.c.bf16 %v402, %v402
        %v409 = vpack.c.bf16 %v403, %v403
        %v410 = vpack.c.bf16 %v404, %v404
        %414 = vrot.lane.b32.xlu0 %v408, 126
        %v415 = vpop.permute.xlu0 %414
        %416 = vrot.lane.b32.xlu0 %v409, 126
        %v417 = vpop.permute.xlu0 %416
        %418 = vrot.lane.b32.xlu0 %v410, 126
        %v419 = vpop.permute.xlu0 %418
        %vm420 = vcmask 1031168
        %v421 = vsel %vm420, %v415, %v417
        %v422 = vsel %vm420, %v417, %v419
        %v424 = vsel %vm307, %v396, 0
        %v427 = vsel %vm311, %v421, 0
        %v430 = vsel %vm311, %v422, 0
        %432 = vmatpush.bf16.msra.mxu0 0
        %433 = vmatpush.bf16.msra.mxu0 0
        %434 = vmatpush.bf16.msra.mxu0 0
        %435 = vmatpush.bf16.msra.mxu0 0
        %436 = vmatpush.bf16.msra.mxu0 0
        %437 = vmatpush.bf16.msra.mxu0 0
        %438 = vmatpush.bf16.msra.mxu0 0
        %439 = vmatpush.bf16.msra.mxu0 %v427
        %440 = vmatmul.bf16.gmra.mxu0 %v424
        %v441 = vpop.f32.mrf.mxu0
        %v442 = vadd.f32 0.0, %v441
        %v443 = vpop.f32.mrf.mxu0
        %444 = vdwg.mxu0
        %445 = vmatpush.bf16.msra.mxu0 0
        %446 = vmatpush.bf16.msra.mxu0 0
        %447 = vmatpush.bf16.msra.mxu0 0
        %448 = vmatpush.bf16.msra.mxu0 0
        %449 = vmatpush.bf16.msra.mxu0 0
        %450 = vmatpush.bf16.msra.mxu0 0
        %451 = vmatpush.bf16.msra.mxu0 0
        %452 = vmatpush.bf16.msra.mxu0 %v430
        %453 = vmatmul.bf16.gmra.mxu0 %v424
        %v454 = vpop.f32.mrf.mxu0
        %v455 = vadd.f32 0.0, %v454
        %v456 = vpop.f32.mrf.mxu0
        %457 = vdwg.mxu0
        %v458 = vadd.f32 %v363, %v442
        %v459 = vadd.f32 %v376, %v455
        %v460 = vld [vmem:[%s249] sm:$0xff]
        %v461 = vld [vmem:[%s249 + $0x8] sm:$0xf]
        %462 = vrot.lane.b32.xlu0 %v265, 16
        %v463 = vpop.permute.xlu0 %462
        %v464 = vrot.slane %v463, 4
        %vm465 = vcmask 130048
        %v466 = vsel %vm465, %v464, %v463
        %v469 = vmul.f32 %v460, %v466
        %v470 = vmul.f32 %v461, %v464
        %s471 = scalar_lea.vmem %s1, 12
        %v472 = vld [vmem:[%s471] sm:$0xf]
        %475 = vst [vmem:[#allocation1] ss:$2 sm:$0xff] %v469
        %s476 = scalar_lea.vmem [#allocation1], 16
        %477 = vst [vmem:[%s476] ss:$2 sm:$0xff] %v470
        %v478 = vld.sshfl [vmem:[#allocation1] sm:$0xff pattern:$0x75316420]
        %v479 = vld.sshfl [vmem:[#allocation1 + $0x8] sm:$0xff pattern:$0x75316420]
        %v480 = vld.sshfl [vmem:[#allocation1 + $0x10] sm:$0xff pattern:$0x75316420]
        %v484 = vpack.c.bf16 %v478, %v478
        %v485 = vpack.c.bf16 %v479, %v479
        %v486 = vpack.c.bf16 %v480, %v480
        %490 = vrot.lane.b32.xlu0 %v484, 112
        %v491 = vpop.permute.xlu0 %490
        %492 = vrot.lane.b32.xlu0 %v485, 112
        %v493 = vpop.permute.xlu0 %492
        %494 = vrot.lane.b32.xlu0 %v486, 112
        %v495 = vpop.permute.xlu0 %494
        %vm496 = vcmask 916480
        %v497 = vsel %vm496, %v491, %v493
        %v498 = vsel %vm496, %v493, %v495
        %v500 = vsel %vm307, %v472, 0
        %v503 = vsel %vm311, %v497, 0
        %v506 = vsel %vm311, %v498, 0
        %508 = vmatpush.bf16.msra.mxu0 0
        %509 = vmatpush.bf16.msra.mxu0 0
        %510 = vmatpush.bf16.msra.mxu0 0
        %511 = vmatpush.bf16.msra.mxu0 0
        %512 = vmatpush.bf16.msra.mxu0 0
        %513 = vmatpush.bf16.msra.mxu0 0
        %514 = vmatpush.bf16.msra.mxu0 0
        %515 = vmatpush.bf16.msra.mxu0 %v503
        %516 = vmatmul.bf16.gmra.mxu0 %v500
        %v517 = vpop.f32.mrf.mxu0
        %v518 = vadd.f32 0.0, %v517
        %v519 = vpop.f32.mrf.mxu0
        %520 = vdwg.mxu0
        %521 = vmatpush.bf16.msra.mxu0 0
        %522 = vmatpush.bf16.msra.mxu0 0
        %523 = vmatpush.bf16.msra.mxu0 0
        %524 = vmatpush.bf16.msra.mxu0 0
        %525 = vmatpush.bf16.msra.mxu0 0
        %526 = vmatpush.bf16.msra.mxu0 0
        %527 = vmatpush.bf16.msra.mxu0 0
        %528 = vmatpush.bf16.msra.mxu0 %v506
        %529 = vmatmul.bf16.gmra.mxu0 %v500
        %v530 = vpop.f32.mrf.mxu0
        %v531 = vadd.f32 0.0, %v530
        %v532 = vpop.f32.mrf.mxu0
        %533 = vdwg.mxu0
        %v534 = vadd.f32 %v458, %v518
        %v535 = vadd.f32 %v459, %v531
        %s536 = scalar_lea.vmem %s1, 16
        %v537 = vld [vmem:[%s536] sm:$0xf]
        %540 = vst [vmem:[#allocation1] ss:$2 sm:$0xff] %v257
        %s541 = scalar_lea.vmem [#allocation1], 16
        %542 = vst [vmem:[%s541] ss:$2 sm:$0xff] %v258
        %v543 = vld.sshfl [vmem:[#allocation1] sm:$0xff pattern:$0x75316420]
        %v544 = vld.sshfl [vmem:[#allocation1 + $0x8] sm:$0xff pattern:$0x75316420]
        %v545 = vld.sshfl [vmem:[#allocation1 + $0x10] sm:$0xff pattern:$0x75316420]
        %v549 = vpack.c.bf16 %v543, %v543
        %v550 = vpack.c.bf16 %v544, %v544
        %v551 = vpack.c.bf16 %v545, %v545
        %555 = vrot.lane.b32.xlu0 %v549, 111
        %v556 = vpop.permute.xlu0 %555
        %557 = vrot.lane.b32.xlu0 %v550, 111
        %v558 = vpop.permute.xlu0 %557
        %559 = vrot.lane.b32.xlu0 %v551, 111
        %v560 = vpop.permute.xlu0 %559
        %vm561 = vcmask 908288
        %v562 = vsel %vm561, %v556, %v558
        %v563 = vsel %vm561, %v558, %v560
        %v565 = vsel %vm307, %v537, 0
        %v568 = vsel %vm311, %v562, 0
        %v571 = vsel %vm311, %v563, 0
        %573 = vmatpush.bf16.msra.mxu0 0
        %574 = vmatpush.bf16.msra.mxu0 0
        %575 = vmatpush.bf16.msra.mxu0 0
        %576 = vmatpush.bf16.msra.mxu0 0
        %577 = vmatpush.bf16.msra.mxu0 0
        %578 = vmatpush.bf16.msra.mxu0 0
        %579 = vmatpush.bf16.msra.mxu0 0
        %580 = vmatpush.bf16.msra.mxu0 %v568
        %581 = vmatmul.bf16.gmra.mxu0 %v565
        %v582 = vpop.f32.mrf.mxu0
        %v583 = vadd.f32 0.0, %v582
        %v584 = vpop.f32.mrf.mxu0
        %585 = vdwg.mxu0
        %586 = vmatpush.bf16.msra.mxu0 0
        %587 = vmatpush.bf16.msra.mxu0 0
        %588 = vmatpush.bf16.msra.mxu0 0
        %589 = vmatpush.bf16.msra.mxu0 0
        %590 = vmatpush.bf16.msra.mxu0 0
        %591 = vmatpush.bf16.msra.mxu0 0
        %592 = vmatpush.bf16.msra.mxu0 0
        %593 = vmatpush.bf16.msra.mxu0 %v571
        %594 = vmatmul.bf16.gmra.mxu0 %v565
        %v595 = vpop.f32.mrf.mxu0
        %v596 = vadd.f32 0.0, %v595
        %v597 = vpop.f32.mrf.mxu0
        %598 = vdwg.mxu0
        %v599 = vadd.f32 %v534, %v583
        %v600 = vadd.f32 %v535, %v596
        %v601 = vld [vmem:[%s249] sm:$0xff]
        %v602 = vld [vmem:[%s249 + $0x8] sm:$0xf]
        %603 = vrot.lane.b32.xlu0 %v385, 18
        %v604 = vpop.permute.xlu0 %603
        %v605 = vrot.slane %v604, 4
        %vm606 = vcmask 146432
        %v607 = vsel %vm606, %v605, %v604
        %v610 = vmul.f32 %v601, %v607
        %v611 = vmul.f32 %v602, %v605
        %s612 = scalar_lea.vmem %s1, 20
        %v613 = vld [vmem:[%s612] sm:$0xf]
        %616 = vst [vmem:[#allocation1] ss:$2 sm:$0xff] %v610
        %s617 = scalar_lea.vmem [#allocation1], 16
        %618 = vst [vmem:[%s617] ss:$2 sm:$0xff] %v611
        %v619 = vld.sshfl [vmem:[#allocation1] sm:$0xff pattern:$0x75316420]
        %v620 = vld.sshfl [vmem:[#allocation1 + $0x8] sm:$0xff pattern:$0x75316420]
        %v621 = vld.sshfl [vmem:[#allocation1 + $0x10] sm:$0xff pattern:$0x75316420]
        %v625 = vpack.c.bf16 %v619, %v619
        %v626 = vpack.c.bf16 %v620, %v620
        %v627 = vpack.c.bf16 %v621, %v621
        %631 = vrot.lane.b32.xlu0 %v625, 110
        %v632 = vpop.permute.xlu0 %631
        %633 = vrot.lane.b32.xlu0 %v626, 110
        %v634 = vpop.permute.xlu0 %633
        %635 = vrot.lane.b32.xlu0 %v627, 110
        %v636 = vpop.permute.xlu0 %635
        %vm637 = vcmask 900096
        %v638 = vsel %vm637, %v632, %v634
        %v639 = vsel %vm637, %v634, %v636
        %v641 = vsel %vm307, %v613, 0
        %v644 = vsel %vm311, %v638, 0
        %v647 = vsel %vm311, %v639, 0
        %649 = vmatpush.bf16.msra.mxu0 0
        %650 = vmatpush.bf16.msra.mxu0 0
        %651 = vmatpush.bf16.msra.mxu0 0
        %652 = vmatpush.bf16.msra.mxu0 0
        %653 = vmatpush.bf16.msra.mxu0 0
        %654 = vmatpush.bf16.msra.mxu0 0
        %655 = vmatpush.bf16.msra.mxu0 0
        %656 = vmatpush.bf16.msra.mxu0 %v644
        %657 = vmatmul.bf16.gmra.mxu0 %v641
        %v658 = vpop.f32.mrf.mxu0
        %v659 = vadd.f32 0.0, %v658
        %v660 = vpop.f32.mrf.mxu0
        %661 = vdwg.mxu0
        %662 = vmatpush.bf16.msra.mxu0 0
        %663 = vmatpush.bf16.msra.mxu0 0
        %664 = vmatpush.bf16.msra.mxu0 0
        %665 = vmatpush.bf16.msra.mxu0 0
        %666 = vmatpush.bf16.msra.mxu0 0
        %667 = vmatpush.bf16.msra.mxu0 0
        %668 = vmatpush.bf16.msra.mxu0 0
        %669 = vmatpush.bf16.msra.mxu0 %v647
        %670 = vmatmul.bf16.gmra.mxu0 %v641
        %v671 = vpop.f32.mrf.mxu0
        %v672 = vadd.f32 0.0, %v671
        %v673 = vpop.f32.mrf.mxu0
        %674 = vdwg.mxu0
        %v675 = vadd.f32 %v599, %v659
        %v676 = vadd.f32 %v600, %v672
        %v677 = vld [vmem:[%s249] sm:$0xff]
        %v678 = vld [vmem:[%s249 + $0x8] sm:$0xf]
        %679 = vrot.lane.b32.xlu0 %v265, 32
        %v680 = vpop.permute.xlu0 %679
        %v681 = vrot.slane %v680, 4
        %vm682 = vcmask 261120
        %v683 = vsel %vm682, %v681, %v680
        %v686 = vmul.f32 %v677, %v683
        %v687 = vmul.f32 %v678, %v681
        %s688 = scalar_lea.vmem %s1, 24
        %v689 = vld [vmem:[%s688] sm:$0xf]
        %692 = vst [vmem:[#allocation1] ss:$2 sm:$0xff] %v686
        %s693 = scalar_lea.vmem [#allocation1], 16
        %694 = vst [vmem:[%s693] ss:$2 sm:$0xff] %v687
        %v695 = vld.sshfl [vmem:[#allocation1] sm:$0xff pattern:$0x75316420]
        %v696 = vld.sshfl [vmem:[#allocation1 + $0x8] sm:$0xff pattern:$0x75316420]
        %v697 = vld.sshfl [vmem:[#allocation1 + $0x10] sm:$0xff pattern:$0x75316420]
        %v701 = vpack.c.bf16 %v695, %v695
        %v702 = vpack.c.bf16 %v696, %v696
        %v703 = vpack.c.bf16 %v697, %v697
        %707 = vrot.lane.b32.xlu0 %v701, 96
        %v708 = vpop.permute.xlu0 %707
        %709 = vrot.lane.b32.xlu0 %v702, 96
        %v710 = vpop.permute.xlu0 %709
        %711 = vrot.lane.b32.xlu0 %v703, 96
        %v712 = vpop.permute.xlu0 %711
        %vm713 = vcmask 785408
        %v714 = vsel %vm713, %v708, %v710
        %v715 = vsel %vm713, %v710, %v712
        %v717 = vsel %vm307, %v689, 0
        %v720 = vsel %vm311, %v714, 0
        %v723 = vsel %vm311, %v715, 0
        %725 = vmatpush.bf16.msra.mxu0 0
        %726 = vmatpush.bf16.msra.mxu0 0
        %727 = vmatpush.bf16.msra.mxu0 0
        %728 = vmatpush.bf16.msra.mxu0 0
        %729 = vmatpush.bf16.msra.mxu0 0
        %730 = vmatpush.bf16.msra.mxu0 0
        %731 = vmatpush.bf16.msra.mxu0 0
        %732 = vmatpush.bf16.msra.mxu0 %v720
        %733 = vmatmul.bf16.gmra.mxu0 %v717
        %v734 = vpop.f32.mrf.mxu0
        %v735 = vadd.f32 0.0, %v734
        %v736 = vpop.f32.mrf.mxu0
        %737 = vdwg.mxu0
        %738 = vmatpush.bf16.msra.mxu0 0
        %739 = vmatpush.bf16.msra.mxu0 0
        %740 = vmatpush.bf16.msra.mxu0 0
        %741 = vmatpush.bf16.msra.mxu0 0
        %742 = vmatpush.bf16.msra.mxu0 0
        %743 = vmatpush.bf16.msra.mxu0 0
        %744 = vmatpush.bf16.msra.mxu0 0
        %745 = vmatpush.bf16.msra.mxu0 %v723
        %746 = vmatmul.bf16.gmra.mxu0 %v717
        %v747 = vpop.f32.mrf.mxu0
        %v748 = vadd.f32 0.0, %v747
        %v749 = vpop.f32.mrf.mxu0
        %750 = vdwg.mxu0
        %v751 = vadd.f32 %v675, %v735
        %v752 = vadd.f32 %v676, %v748
        %v753 = vld [vmem:[%s249] sm:$0xff]
        %v754 = vld [vmem:[%s249 + $0x8] sm:$0xf]
        %s755 = scalar_lea.vmem %s1, 28
        %v756 = vld [vmem:[%s755] sm:$0xf]
        %759 = vst [vmem:[#allocation1] ss:$2 sm:$0xff] %v753
        %s760 = scalar_lea.vmem [#allocation1], 16
        %761 = vst [vmem:[%s760] ss:$2 sm:$0xff] %v754
        %v762 = vld.sshfl [vmem:[#allocation1] sm:$0xff pattern:$0x75316420]
        %v763 = vld.sshfl [vmem:[#allocation1 + $0x8] sm:$0xff pattern:$0x75316420]
        %v764 = vld.sshfl [vmem:[#allocation1 + $0x10] sm:$0xff pattern:$0x75316420]
        %v768 = vpack.c.bf16 %v762, %v762
        %v769 = vpack.c.bf16 %v763, %v763
        %v770 = vpack.c.bf16 %v764, %v764
        %774 = vrot.lane.b32.xlu0 %v768, 95
        %v775 = vpop.permute.xlu0 %774
        %776 = vrot.lane.b32.xlu0 %v769, 95
        %v777 = vpop.permute.xlu0 %776
        %778 = vrot.lane.b32.xlu0 %v770, 95
        %v779 = vpop.permute.xlu0 %778
        %vm780 = vcmask 777216
        %v781 = vsel %vm780, %v775, %v777
        %v782 = vsel %vm780, %v777, %v779
        %v784 = vsel %vm307, %v756, 0
        %v787 = vsel %vm311, %v781, 0
        %v790 = vsel %vm311, %v782, 0
        %792 = vmatpush.bf16.msra.mxu0 0
        %793 = vmatpush.bf16.msra.mxu0 0
        %794 = vmatpush.bf16.msra.mxu0 0
        %795 = vmatpush.bf16.msra.mxu0 0
        %796 = vmatpush.bf16.msra.mxu0 0
        %797 = vmatpush.bf16.msra.mxu0 0
        %798 = vmatpush.bf16.msra.mxu0 0
        %799 = vmatpush.bf16.msra.mxu0 %v787
        %800 = vmatmul.bf16.gmra.mxu0 %v784
        %v801 = vpop.f32.mrf.mxu0
        %v802 = vadd.f32 0.0, %v801
        %v803 = vpop.f32.mrf.mxu0
        %804 = vdwg.mxu0
        %805 = vmatpush.bf16.msra.mxu0 0
        %806 = vmatpush.bf16.msra.mxu0 0
        %807 = vmatpush.bf16.msra.mxu0 0
        %808 = vmatpush.bf16.msra.mxu0 0
        %809 = vmatpush.bf16.msra.mxu0 0
        %810 = vmatpush.bf16.msra.mxu0 0
        %811 = vmatpush.bf16.msra.mxu0 0
        %812 = vmatpush.bf16.msra.mxu0 %v790
        %813 = vmatmul.bf16.gmra.mxu0 %v784
        %v814 = vpop.f32.mrf.mxu0
        %v815 = vadd.f32 0.0, %v814
        %v816 = vpop.f32.mrf.mxu0
        %817 = vdwg.mxu0
        %v818 = vadd.f32 %v751, %v802
        %v819 = vadd.f32 %v752, %v815
        %v820 = vld [vmem:[%s249] sm:$0xff]
        %v821 = vld [vmem:[%s249 + $0x8] sm:$0xf]
        %822 = vrot.lane.b32.xlu0 %v385, 34
        %v823 = vpop.permute.xlu0 %822
        %v824 = vrot.slane %v823, 4
        %vm825 = vcmask 277504
        %v826 = vsel %vm825, %v824, %v823
        %v829 = vmul.f32 %v820, %v826
        %v830 = vmul.f32 %v821, %v824
        %s831 = scalar_lea.vmem %s1, 32
        %v832 = vld [vmem:[%s831] sm:$0xf]
        %835 = vst [vmem:[#allocation1] ss:$2 sm:$0xff] %v829
        %s836 = scalar_lea.vmem [#allocation1], 16
        %837 = vst [vmem:[%s836] ss:$2 sm:$0xff] %v830
        %v838 = vld.sshfl [vmem:[#allocation1] sm:$0xff pattern:$0x75316420]
        %v839 = vld.sshfl [vmem:[#allocation1 + $0x8] sm:$0xff pattern:$0x75316420]
        %v840 = vld.sshfl [vmem:[#allocation1 + $0x10] sm:$0xff pattern:$0x75316420]
        %v844 = vpack.c.bf16 %v838, %v838
        %v845 = vpack.c.bf16 %v839, %v839
        %v846 = vpack.c.bf16 %v840, %v840
        %850 = vrot.lane.b32.xlu0 %v844, 94
        %v851 = vpop.permute.xlu0 %850
        %852 = vrot.lane.b32.xlu0 %v845, 94
        %v853 = vpop.permute.xlu0 %852
        %854 = vrot.lane.b32.xlu0 %v846, 94
        %v855 = vpop.permute.xlu0 %854
        %vm856 = vcmask 769024
        %v857 = vsel %vm856, %v851, %v853
        %v858 = vsel %vm856, %v853, %v855
        %v860 = vsel %vm307, %v832, 0
        %v863 = vsel %vm311, %v857, 0
        %v866 = vsel %vm311, %v858, 0
        %868 = vmatpush.bf16.msra.mxu0 0
        %869 = vmatpush.bf16.msra.mxu0 0
        %870 = vmatpush.bf16.msra.mxu0 0
        %871 = vmatpush.bf16.msra.mxu0 0
        %872 = vmatpush.bf16.msra.mxu0 0
        %873 = vmatpush.bf16.msra.mxu0 0
        %874 = vmatpush.bf16.msra.mxu0 0
        %875 = vmatpush.bf16.msra.mxu0 %v863
        %876 = vmatmul.bf16.gmra.mxu0 %v860
        %v877 = vpop.f32.mrf.mxu0
        %v878 = vadd.f32 0.0, %v877
        %v879 = vpop.f32.mrf.mxu0
        %880 = vdwg.mxu0
        %881 = vmatpush.bf16.msra.mxu0 0
        %882 = vmatpush.bf16.msra.mxu0 0
        %883 = vmatpush.bf16.msra.mxu0 0
        %884 = vmatpush.bf16.msra.mxu0 0
        %885 = vmatpush.bf16.msra.mxu0 0
        %886 = vmatpush.bf16.msra.mxu0 0
        %887 = vmatpush.bf16.msra.mxu0 0
        %888 = vmatpush.bf16.msra.mxu0 %v866
        %889 = vmatmul.bf16.gmra.mxu0 %v860
        %v890 = vpop.f32.mrf.mxu0
        %v891 = vadd.f32 0.0, %v890
        %v892 = vpop.f32.mrf.mxu0
        %893 = vdwg.mxu0
        %v894 = vadd.f32 %v818, %v878
        %v895 = vadd.f32 %v819, %v891
        %897 = vset.pattern.permute.xlu0 0
        %898 = vperm.xlu0 %897, %v254
        %v899 = vpop.permute.xlu0 %898
        %v901 = vadd.f32 %v894, %v899
        %v902 = vadd.f32 %v895, %v899
        %v903 = vxor.u32 %v901, 2147483648
        %v904 = vxor.u32 %v902, 2147483648
        %v905 = vmul.f32 %v903, 1.442695
        %v906 = vpow.pop %v905
        %v907 = vmul.f32 %v904, 1.442695
        %v908 = vpow.pop %v907
        %v909 = vadd.f32 %v906, 1.0
        %v910 = vadd.f32 %v908, 1.0
        %v911 = vrcp.pop %v909
        %v912 = vmul.f32 %v909, %v911
        %v913 = vsub.f32 1.0, %v912
        %v914 = vmul.f32 %v911, %v913
        %v915 = vadd.f32 %v911, %v914
        %vm916 = vweird.f32 %v909
        %vm917 = vweird.f32 %v911
        %vm918 = vmor %vm916, %vm917
        %v919 = vsel %vm918, %v911, %v915
        %v920 = vand.u32 2147483647, %v909
        %vm921 = vcmp.eq.f32.partialorder %v920, 8.507059e+37
        %v922 = vand.u32 %v909, 2147483648
        %v923 = vor.u32 1.1754944e-38, %v922
        %v924 = vsel %vm921, %v923, %v919
        %v925 = vmul.f32 1.0, %v924
        %v926 = vrcp.pop %v910
        %v927 = vmul.f32 %v910, %v926
        %v928 = vsub.f32 1.0, %v927
        %v929 = vmul.f32 %v926, %v928
        %v930 = vadd.f32 %v926, %v929
        %vm931 = vweird.f32 %v910
        %vm932 = vweird.f32 %v926
        %vm933 = vmor %vm931, %vm932
        %v934 = vsel %vm933, %v926, %v930
        %v935 = vand.u32 2147483647, %v910
        %vm936 = vcmp.eq.f32.partialorder %v935, 8.507059e+37
        %v937 = vand.u32 %v910, 2147483648
        %v938 = vor.u32 1.1754944e-38, %v937
        %v939 = vsel %vm936, %v938, %v934
        %v940 = vmul.f32 1.0, %v939
        %v941 = vmul.f32 %v901, %v925
        %v942 = vmul.f32 %v902, %v940
        %944 = vset.pattern.permute.xlu0 0
        %945 = vperm.xlu0 %944, %v256
        %v946 = vpop.permute.xlu0 %945
        %vm948 = vcmask 64512
        %v950 = vsel %vm948, %v255, 0
        %952 = vmatpush.msra.mxu0 0.0
        %953 = vmatpush.msra.mxu0 0.0
        %954 = vmatpush.msra.mxu0 0.0
        %955 = vmatpush.msra.mxu0 0.0
        %956 = vmatpush.msra.mxu0 0.0
        %957 = vmatpush.msra.mxu0 0.0
        %958 = vmatpush.msra.mxu0 0.0
        %959 = vmatpush.msra.mxu0 0.0
        %960 = vmatpush.msra.mxu0 0.0
        %961 = vmatpush.msra.mxu0 0.0
        %962 = vmatpush.msra.mxu0 0.0
        %963 = vmatpush.msra.mxu0 0.0
        %964 = vmatpush.msra.mxu0 0.0
        %965 = vmatpush.msra.mxu0 0.0
        %966 = vmatpush.msra.mxu0 0.0
        %967 = vmatpush.msra.mxu0 %v941
        %968 = vmatmul.f32.gmra.mxu0 %v950
        %v969 = vpop.f32.mrf.mxu0
        %v970 = vadd.f32 %v946, %v969
        %971 = vdwg.mxu0
        %972 = vmatpush.msra.mxu0 0.0
        %973 = vmatpush.msra.mxu0 0.0
        %974 = vmatpush.msra.mxu0 0.0
        %975 = vmatpush.msra.mxu0 0.0
        %976 = vmatpush.msra.mxu0 0.0
        %977 = vmatpush.msra.mxu0 0.0
        %978 = vmatpush.msra.mxu0 0.0
        %979 = vmatpush.msra.mxu0 0.0
        %980 = vmatpush.msra.mxu0 0.0
        %981 = vmatpush.msra.mxu0 0.0
        %982 = vmatpush.msra.mxu0 0.0
        %983 = vmatpush.msra.mxu0 0.0
        %984 = vmatpush.msra.mxu0 0.0
        %985 = vmatpush.msra.mxu0 0.0
        %986 = vmatpush.msra.mxu0 0.0
        %987 = vmatpush.msra.mxu0 %v942
        %988 = vmatmul.f32.gmra.mxu0 %v950
        %v989 = vpop.f32.mrf.mxu0
        %v990 = vadd.f32 %v946, %v989
        %991 = vdwg.mxu0
        %v994 = vrot.slane %v990, 4
        %v995 = vsel %vm264, %v970, %v994
        %996 = vrot.lane.b32.xlu0 %v995, 17
        %v997 = vpop.permute.xlu0 %996
        %v998 = vrot.slane %v997, 4
        %vm999 = vcmask 138240
        %v1000 = vsel %vm999, %v998, %v997
        %v1003 = vadd.f32 %v257, %v1000
        %v1004 = vadd.f32 %v258, %v998
        %1007 = vrot.lane.b32.xlu0 %v1003, 111
        %v1008 = vpop.permute.xlu0 %1007
        %1009 = vrot.lane.b32.xlu0 %v1004, 111
        %v1010 = vpop.permute.xlu0 %1009
        %v1011 = vrot.slane %v1008, 4
        %v1012 = vrot.slane %v1010, 4
        %v1013 = vsel %vm264, %v1011, %v1012
        %vm1014 = vcmask 908288
        %v1015 = vsel %vm1014, %v1008, %v1013
        %1017 = vst [vmem:[%s244] sm:$0xff] %v1015
        %s1018 = sand.u32 %s159, 1
        %s1019 = scalar_lea.sflag [#allocation3], %s1018
        %s1020 = sand.u32 %s159, 1
        %s1021 = smul.addr %s1020, 8
        %s1022 = scalar_lea.vmem [#allocation2], %s1021
        // Predicated region
        $region45: #{tpu_custom_call.1} parent=43 // pred_check
          %p1023 = pneg %p169
        $region46: #{tpu_custom_call.1} parent=43 // pred_check_branch
          %1025 = sbr.rel (%p1023) target = $region48
        $region47: #{tpu_custom_call.1} parent=43 // pred_region
          %1027 = vsyncadd %s1019, 0
          %s1028 = smul.addr %s20, 2
          %s1029 = smul.addr %s1028, 4
          %s1030 = scalar_lea.hbm %s6, %s1029
          %s1032 = sshll.u32 %s1022, 4
          %s1033 = int_to_ptr.vmem [resolvable:$true] %s1032
          %s1034 = sshll.u32 %s1030, 4
          %s1035 = int_to_ptr.hbm [resolvable:$true] %s1034
          %1037 = dma.vmem_to_hbm [thread:$0]  %s1033, 128, %s1035, %s1019
        $region48: #{tpu_custom_call.1} parent=43 // pred_fallthru
          _
      $region44: #{tpu_custom_call.1} parent=5 // pred_fallthru
        _
      %p1038 = scmp.le.s32.totalorder 2, %s15
      // Predicated region
      $region49: #{tpu_custom_call.1} parent=5 // pred_check
        %p1039 = pneg %p1038
      $region50: #{tpu_custom_call.1} parent=5 // pred_check_branch
        %1041 = sbr.rel (%p1039) target = $region52
      $region51: #{tpu_custom_call.1} parent=5 // pred_region
        %s1042 = ssub.s32 %s15, 2
        // Predicated region
        $region53: #{tpu_custom_call.1} parent=51 // pred_check
          %p1043 = pneg %p175
        $region54: #{tpu_custom_call.1} parent=51 // pred_check_branch
          %1045 = sbr.rel (%p1043) target = $region56
        $region55: #{tpu_custom_call.1} parent=51 // pred_region
          %s1046 = sand.u32 %s160, 1
          %s1047 = scalar_lea.sflag [#allocation3], %s1046
          %s1048 = sand.u32 %s160, 1
          %s1049 = smul.addr %s1048, 8
          %s1050 = scalar_lea.vmem [#allocation2], %s1049
          %1052 = dma.done %s1047, 128
        $region56: #{tpu_custom_call.1} parent=51 // pred_fallthru
          _
      $region52: #{tpu_custom_call.1} parent=5 // pred_fallthru
        _
    $region6: #{tpu_custom_call.1} parent=1 // loop_footer
      %s19 = sadd.s32 1, %s15
    $region7: #{tpu_custom_call.1} parent=1 // loop_footer_branch
      %14 = sbr.rel target = $region3
    $region8: #{tpu_custom_call.1} parent=1 // loop_exit
      _
    %1053 = vsyncpa [#allocation3], 1
    %s1054 = scalar_lea.sflag [#allocation3], 1
    %1055 = vsyncpa %s1054, 1

</llo_original>
